<compile_context>
chip_gen: v5e
topology: v5e:2x2
jax: 0.10.0
libtpu: 0.0.40
codegen_flags: <defaults>
</compile_context>

<pallas_src>
import jax
import jax.numpy as jnp
from jax.experimental import pallas as pl
from jax.experimental.pallas import tpu as pltpu

_WIDE_LANE_CANDIDATES = (4096, 2048, 1024, 512, 256, 128)


def _pick_block_bytes() -> int:
    """Generation-aware target bytes per block buffer."""
    try:
        kind = jax.devices()[0].device_kind.lower()
    except Exception:  # no device / early import — conservative default
        kind = ""
    if ("v7" in kind) or ("7x" in kind) or ("v6" in kind):
        # v6e/v7x: 32 MiB default scoped VMEM; 4 buffers x 4 MiB = 16 MiB fits.
        return 4 * 1024 * 1024
    # v5e (16 MiB default scoped VMEM) and unknown chips.
    return 2 * 1024 * 1024


_BLOCK_BYTES = _pick_block_bytes()


def _mul_kernel(w_ref, x_ref, o_ref):
    # w_ref: (1,) scalar in SMEM (output dtype); x_ref / o_ref: VMEM tiles.
    # Single VPU multiply over the whole tile; astype is a no-op for floats
    # and performs the int->float promotion for integer inputs.
    o_ref[...] = (x_ref[...] * w_ref[0]).astype(o_ref.dtype)


def _lane_dense_2d(flat: jax.Array) -> jax.Array:
    """Reshape a flat array (size % 128 == 0) to a lane-dense 2-D slab.

    Prefers the widest lane dim that still leaves >= 8 rows (full sublane
    utilisation); otherwise the widest divisor.  Never emits a width < 128.
    """
    n = flat.size
    best = 128
    for w in _WIDE_LANE_CANDIDATES:
        if n % w == 0:
            if n // w >= 8:
                return flat.reshape(n // w, w)
            if best == 128:
                best = w
    return flat.reshape(n // best, best)


def _pallas_mul_2d(x2d: jax.Array, w_arr: jax.Array, out_dtype) -> jax.Array:
    rows, width = x2d.shape
    in_itemsize = jnp.dtype(x2d.dtype).itemsize
    out_itemsize = jnp.dtype(out_dtype).itemsize
    buf_itemsize = max(in_itemsize, out_itemsize)

    # Dtype-aware row blocking: multiple of the sublane packing, sized so the
    # larger of the (input, output) block buffers is ~_BLOCK_BYTES.
    sublane_pack = 8 * max(1, 4 // in_itemsize)     # 8 f32, 16 bf16, 32 int8
    block_rows = (_BLOCK_BYTES // (width * buf_itemsize)) // sublane_pack
    block_rows = max(block_rows, 1) * sublane_pack

    # Megacore: for inputs above ~1 MiB make sure the grid has >= 2 steps so
    # v7x's two TensorCores both get work.
    total_bytes = rows * width * in_itemsize
    if total_bytes > (1 << 20) and rows >= 2 * sublane_pack:
        half = (rows // (2 * sublane_pack)) * sublane_pack
        block_rows = min(block_rows, max(half, sublane_pack))

    if block_rows >= rows:
        block_rows = rows                            # full extent: always legal
    grid = (pl.cdiv(rows, block_rows),)

    cost = pl.CostEstimate(
        flops=rows * width,
        transcendentals=0,
        bytes_accessed=rows * width * (in_itemsize + out_itemsize),
    )

    return pl.pallas_call(
        _mul_kernel,
        out_shape=jax.ShapeDtypeStruct((rows, width), out_dtype),
        grid=grid,
        in_specs=[
            pl.BlockSpec(memory_space=pltpu.MemorySpace.SMEM),     # weight
            pl.BlockSpec((block_rows, width), lambda i: (i, 0)),   # input tile
        ],
        out_specs=pl.BlockSpec((block_rows, width), lambda i: (i, 0)),
        compiler_params=pltpu.CompilerParams(
            dimension_semantics=("parallel",),
        ),
        cost_estimate=cost,
    )(w_arr, x2d)


def _mul_impl(x: jax.Array, weight) -> jax.Array:
    # Torch promotion: float tensor stays in its dtype; int/bool -> float32.
    out_dtype = x.dtype if jnp.issubdtype(x.dtype, jnp.floating) else jnp.float32
    w_arr = jnp.asarray(weight, dtype=out_dtype).reshape(1)

    flat = x.reshape(-1)
    n = flat.size
    n_main = (n // 128) * 128

    if n_main == 0:
        # Fewer than 128 elements: a kernel launch buys nothing.
        return (flat * w_arr[0]).astype(out_dtype).reshape(x.shape)

    main = flat if n_main == n else flat[:n_main]
    out_flat = _pallas_mul_2d(_lane_dense_2d(main), w_arr, out_dtype).reshape(n_main)

    if n_main != n:
        # TODO(synk): ragged (<128-element) tail is computed with plain XLA,
        # not Pallas, to keep every kernel store unmasked / lane-dense.
        tail = (flat[n_main:] * w_arr[0]).astype(out_dtype)
        out_flat = jnp.concatenate([out_flat, tail])

    return out_flat.reshape(x.shape)


# jit so the reshape / scalar transfer / dispatch are fused and weight stays a
# traced argument (no recompile when the weight value changes).
_mul_jit = jax.jit(_mul_impl)


def mul(x: jax.Array, weight) -> jax.Array:
    """x * weight computed in a Pallas TPU kernel (torch `Mul` semantics)."""
    return _mul_jit(x, weight)


class Mul:
    """JAX mirror of the PyTorch Mul module."""

    def __init__(self, weight: float) -> None:
        self.weight = float(weight)

    def __call__(self, x: jax.Array) -> jax.Array:
        return mul(x, self.weight)


if __name__ == "__main__":
    key = jax.random.PRNGKey(0)
    # NCHW input consistent with the CIFAR-10 context: batch=2, C=4, H=W=16.
    x = jax.random.normal(key, (2, 4, 16, 16), dtype=jnp.float32)

    weight = 0.5  # deterministic "parameter" from __init__(weight)
    m = Mul(weight)

    out = jax.block_until_ready(m(x))

    # Sanity check against plain JAX reference.
    ref = x * weight
    assert out.shape == x.shape, f"shape {out.shape} != {x.shape}"
    assert out.dtype == ref.dtype, f"dtype {out.dtype} != {ref.dtype}"
    assert jnp.allclose(out, ref), "mismatch vs reference"

    print("KERNEL_OK")
</pallas_src>

<mosaic_0001>
module attributes {stable_mosaic.version = 11 : i64} {
  func.func @_mul_kernel(%arg0: i32, %arg1: memref<1xf32, #tpu.memory_space<smem>>, %arg2: memref<8x256xf32, #tpu.memory_space<vmem>>, %arg3: memref<8x256xf32, #tpu.memory_space<vmem>>) attributes {dimension_semantics = [#tpu.dimension_semantics<parallel>], iteration_bounds = array<i64: 1>, scalar_prefetch = 0 : i64, scratch_operands = 0 : i64, tpu.core_type = #tpu.core_type<tc>, window_params = [{transform_indices = @transform_0, window_bounds = array<i64: 1>}, {transform_indices = @transform_1, window_bounds = array<i64: 8, 256>}, {transform_indices = @transform_2, window_bounds = array<i64: 8, 256>}]} {
    %c0 = arith.constant 0 : index
    %c0_0 = arith.constant 0 : index
    %0 = vector.load %arg2[%c0, %c0_0] : memref<8x256xf32, #tpu.memory_space<vmem>>, vector<8x256xf32>
    %c0_1 = arith.constant 0 : index
    %1 = memref.load %arg1[%c0_1] : memref<1xf32, #tpu.memory_space<smem>>
    %2 = vector.broadcast %1 : f32 to vector<8x256xf32>
    %3 = arith.mulf %0, %2 : vector<8x256xf32>
    %c0_2 = arith.constant 0 : index
    %c0_3 = arith.constant 0 : index
    %4 = vector.load %arg3[%c0_2, %c0_3] : memref<8x256xf32, #tpu.memory_space<vmem>>, vector<8x256xf32>
    tpu.vector_store %arg3[%c0_2, %c0_3], %3 {strides = array<i32>} : memref<8x256xf32, #tpu.memory_space<vmem>>, vector<8x256xf32>,
    return
  }
  func.func @transform_0(%arg0: i32) -> i32 {
    %c0_i32 = arith.constant 0 : i32
    %c0_i32_0 = arith.constant 0 : i32
    return %c0_i32 : i32
  }
  func.func @transform_1(%arg0: i32) -> (i32, i32) {
    %c0_i32 = arith.constant 0 : i32
    %c0_i32_0 = arith.constant 0 : i32
    return %arg0, %c0_i32 : i32, i32
  }
  func.func @transform_2(%arg0: i32) -> (i32, i32) {
    %c0_i32 = arith.constant 0 : i32
    %c0_i32_0 = arith.constant 0 : i32
    return %arg0, %c0_i32 : i32, i32
  }
}

</mosaic_0001>

<llo_original>
// kernel: _mul_impl.1
$region0: #{_mul_impl.1}
  #allocation0 [shape = 'u32[]', space=smem, size = 0x4, offset = 0x4, fixed_abs, tag = 'smem constant byte address 0x4 - core index']
  #allocation1 [shape = 'u32[72,128]{1,0:T(1,128)}', space=vmem, size = 0x9000, scoped, tag = 'internal scratch']
  #allocation2 [shape = 'f32[1]{0:T(128)S(6)}', space=smem, size = 0x200, scoped, tag = 'scoped memory for _mul_impl.1']
  %s0 = inlined_call_operand.<no memory space> [shape: f32[1], index: 0, kind: input, shape index: {}]
  %s1 = inlined_call_operand.vmem [shape: f32[8,256], index: 1, kind: input, shape index: {}]
  %s2 = inlined_call_operand.vmem [shape: f32[8,256], index: 2, kind: output, shape index: {}]
  %s3 = sld [smem:[#allocation0]]
  $region18: #{_mul_impl.1} parent=0
    _
  %s5 = ssub.s32 1, %s3
  %s6 = scalar_select 0, %s5, %s3
  %7 = sst [smem:[#allocation2]] %s0
  // Predicated region
  $region2: #{_mul_impl.1} parent=0 // pred_check
    _
  $region3: #{_mul_impl.1} parent=0 // pred_check_branch
    %9 = sbr.rel (0) target = $region5
  $region4: #{_mul_impl.1} parent=0 // pred_region
    _
  $region5: #{_mul_impl.1} parent=0 // pred_fallthru
    _
  // Predicated region
  $region6: #{_mul_impl.1} parent=0 // pred_check
    _
  $region7: #{_mul_impl.1} parent=0 // pred_check_branch
    %11 = sbr.rel (0) target = $region9
  $region8: #{_mul_impl.1} parent=0 // pred_region
    _
  $region9: #{_mul_impl.1} parent=0 // pred_fallthru
    _
  %v12 = vld [vmem:[%s1] sm:$0xff]
  %v13 = vld [vmem:[%s1 + $0x8] sm:$0xff]
  %s14 = sld [smem:[#allocation2]]
  %v15 = vstv %s14
  %v16 = vmul.f32 %v12, %v15
  %v17 = vmul.f32 %v13, %v15
  %18 = vst [vmem:[%s2] sm:$0xff] %v16
  %19 = vst [vmem:[%s2 + $0x8] sm:$0xff] %v17
  // Predicated region
  $region10: #{_mul_impl.1} parent=0 // pred_check
    _
  $region11: #{_mul_impl.1} parent=0 // pred_check_branch
    %21 = sbr.rel (0) target = $region13
  $region12: #{_mul_impl.1} parent=0 // pred_region
    _
  $region13: #{_mul_impl.1} parent=0 // pred_fallthru
    _
  // Predicated region
  $region14: #{_mul_impl.1} parent=0 // pred_check
    _
  $region15: #{_mul_impl.1} parent=0 // pred_check_branch
    %23 = sbr.rel (0) target = $region17
  $region16: #{_mul_impl.1} parent=0 // pred_region
    _
  $region17: #{_mul_impl.1} parent=0 // pred_fallthru
    _

</llo_original>
